<compile_context>
chip_gen: v7x
topology: tpu7x:2x2x1
jax: 0.10.0
libtpu: 0.0.40
codegen_flags: <defaults>
</compile_context>

<pallas_src>
import functools

import jax
import jax.numpy as jnp
from jax.experimental import pallas as pl
from jax.experimental.pallas import tpu as pltpu

LANE = 128
HID1, HID2, HID3 = 400, 100, 10          # true hidden widths of UCI_MLP
DEFAULT_BATCH_TILE = 1024                # per-step live set ~6-9 MiB at this tile


def _round_up(n, m):
    return ((n + m - 1) // m) * m


def _mlp_kernel(x_ref, w1_ref, b1_ref, w2_ref, b2_ref, w3_ref, b3_ref,
                w4_ref, b4_ref, out_ref):
    """One batch tile: 4 matmuls (MXU, f32 accumulate) + fused bias+ReLU (VPU).

    The last matmul uses the augmented W4, so out_ref is a single lane-dense
    slab holding [fc4(h3) | h3[:, :HID3]] — no separate h_output store.
    """
    # fc1 + relu1   (dropout p=0 -> identity; batch_norm=False -> skipped)
    h1 = jnp.maximum(
        jnp.dot(x_ref[...], w1_ref[...], preferred_element_type=jnp.float32)
        + b1_ref[...], 0.0)
    # fc2 + relu2
    h2 = jnp.maximum(
        jnp.dot(h1.astype(w2_ref.dtype), w2_ref[...],
                preferred_element_type=jnp.float32) + b2_ref[...], 0.0)
    # fc3 + relu3  -> h3 (h_output lives in the fused output slab)
    h3 = jnp.maximum(
        jnp.dot(h2.astype(w3_ref.dtype), w3_ref[...],
                preferred_element_type=jnp.float32) + b3_ref[...], 0.0)
    # fused fc4 + identity-copy of h3 -> single lane-dense slab
    out_ref[...] = (
        jnp.dot(h3.astype(w4_ref.dtype), w4_ref[...],
                preferred_element_type=jnp.float32) + b4_ref[...]
    ).astype(out_ref.dtype)


def init_params(key, num_features, num_outputs):
    """nn.Linear-style init: U(-1/sqrt(fan_in), 1/sqrt(fan_in)).

    Weights are stored (in_features, out_features) (transpose of torch's
    .weight) so the kernel computes x @ W + b; biases are (1, out).
    """
    sizes = [(num_features, HID1), (HID1, HID2), (HID2, HID3), (HID3, num_outputs)]
    params = []
    for fan_in, fan_out in sizes:
        key, kw, kb = jax.random.split(key, 3)
        bound = 1.0 / jnp.sqrt(jnp.float32(fan_in))
        w = jax.random.uniform(kw, (fan_in, fan_out), jnp.float32, -bound, bound)
        b = jax.random.uniform(kb, (1, fan_out), jnp.float32, -bound, bound)
        params.extend([w, b])
    return tuple(params)


def prepare_params(params, num_outputs, use_bf16=False):
    """Pad hidden dims to lane (128) multiples and build the augmented W4.

    * x's feature dim is NOT padded (w1 keeps its true input width).
    * W4 is augmented to (128, 128): lanes [0:num_outputs] hold fc4's weights,
      lanes [num_outputs:num_outputs+HID3] hold identity rows copying h3, so a
      single matmul emits both `out` and `h_output` in one lane-dense slab.
    * Zero padding is exact: padded hidden units see zero weight and zero bias
      and relu(0) = 0, so true outputs are unchanged.
    * Biases stay f32 (added after f32 MXU accumulation); weights optionally bf16.
    """
    w1, b1, w2, b2, w3, b3, w4, b4 = params
    wdt = jnp.bfloat16 if use_bf16 else jnp.float32

    nf = w1.shape[0]
    h1p = _round_up(HID1, LANE)                       # 512
    h2p = _round_up(HID2, LANE)                       # 128
    h3p = _round_up(HID3, LANE)                       # 128
    slab = _round_up(num_outputs + HID3, LANE)        # 128 for num_outputs <= 118

    def pad_w(w, pad_in, pad_out):
        fi, fo = w.shape
        wp = jnp.zeros((pad_in, pad_out), jnp.float32)
        wp = wp.at[:fi, :fo].set(w.astype(jnp.float32))
        return wp.astype(wdt)

    def pad_b(b, pad_out):
        b = jnp.reshape(b, (1, -1)).astype(jnp.float32)
        return jnp.zeros((1, pad_out), jnp.float32).at[:, :b.shape[-1]].set(b)

    # Augmented fc4: [ W4 | I_{HID3} ] padded to (h3p, slab).
    w4a = jnp.zeros((HID3, slab), jnp.float32)
    w4a = w4a.at[:, :num_outputs].set(w4.astype(jnp.float32))
    w4a = w4a.at[jnp.arange(HID3), num_outputs + jnp.arange(HID3)].set(1.0)
    w4a_p = jnp.zeros((h3p, slab), jnp.float32).at[:HID3, :].set(w4a).astype(wdt)
    b4a_p = pad_b(b4, slab)                           # zero bias on the h-copy lanes

    return (pad_w(w1, nf, h1p), pad_b(b1, h1p),
            pad_w(w2, h1p, h2p), pad_b(b2, h2p),
            pad_w(w3, h2p, h3p), pad_b(b3, h3p),
            w4a_p, b4a_p)


def _vmem_limit_bytes(tb, num_features, slab_w, use_bf16):
    """~2x the per-step live VMEM set, clamped to [16 MiB, 32 MiB] (v7x-safe)."""
    act_b = 2 if use_bf16 else 4
    h1p = _round_up(HID1, LANE)
    io_bufs = 2 * tb * (num_features + slab_w) * act_b          # x + out slab (double-buffered)
    weights = 2 * (num_features * h1p + h1p * LANE + 2 * LANE * LANE
                   + (h1p + 3 * LANE)) * act_b                  # resident W/b (double-buffered)
    temps = tb * (2 * h1p + 3 * LANE) * 4                       # f32 intermediates
    need = io_bufs + weights + temps
    return int(min(32 * 1024 * 1024, max(16 * 1024 * 1024, 2 * need)))


@functools.partial(jax.jit, static_argnames=("num_outputs", "use_bf16"))
def uci_mlp_forward(x, prepared_params, num_outputs, use_bf16=False):
    """Returns (out, h_output) exactly like UCI_MLP.forward (eval mode)."""
    w1, b1, w2, b2, w3, b3, w4a, b4a = prepared_params
    batch, num_features = x.shape
    slab_w = w4a.shape[1]

    # Batch tile: multiple of the native sublane pack (8 for f32, 16 for bf16),
    # capped at DEFAULT_BATCH_TILE, and split so that batch produces >=2 grid
    # steps whenever possible (v7x megacore sharding over the "parallel" axis).
    sub = 16 if use_bf16 else 8
    half = (batch + 1) // 2
    tb = min(DEFAULT_BATCH_TILE, _round_up(max(half, 1), sub))
    grid = (pl.cdiv(batch, tb),)     # partial last tile: padded reads, masked writes

    act_dtype = jnp.bfloat16 if use_bf16 else jnp.float32
    xq = x.astype(act_dtype)         # no-op in f32 mode; bf16 mode quantizes activations too

    def resident_spec(shape):        # weights/biases: same block every step -> VMEM-resident
        return pl.BlockSpec(shape, lambda i: (0, 0))

    slab = pl.pallas_call(
        _mlp_kernel,
        out_shape=jax.ShapeDtypeStruct((batch, slab_w), act_dtype),
        grid=grid,
        in_specs=[pl.BlockSpec((tb, num_features), lambda i: (i, 0)),
                  resident_spec(w1.shape), resident_spec(b1.shape),
                  resident_spec(w2.shape), resident_spec(b2.shape),
                  resident_spec(w3.shape), resident_spec(b3.shape),
                  resident_spec(w4a.shape), resident_spec(b4a.shape)],
        out_specs=pl.BlockSpec((tb, slab_w), lambda i: (i, 0)),
        compiler_params=pltpu.CompilerParams(
            dimension_semantics=("parallel",),     # megacore on v7x
            vmem_limit_bytes=_vmem_limit_bytes(tb, num_features, slab_w, use_bf16)),
    )(xq, w1, b1, w2, b2, w3, b3, w4a, b4a)

    # Narrow column slices off the single lane-dense slab (cheap; no row slicing).
    out = slab[:, :num_outputs]
    h_output = slab[:, num_outputs:num_outputs + HID3]
    return out, h_output


def _reference_forward(x, params):
    """Pure-JAX reference matching the PyTorch forward (eval, dropout=0)."""
    w1, b1, w2, b2, w3, b3, w4, b4 = params
    h = jnp.maximum(x @ w1 + b1, 0.0)
    h = jnp.maximum(h @ w2 + b2, 0.0)
    h_output = jnp.maximum(h @ w3 + b3, 0.0)
    out = h_output @ w4 + b4
    return out, h_output


if __name__ == "__main__":
    num_features = 32
    num_outputs = 8

    key = jax.random.PRNGKey(0)
    key, kx = jax.random.split(key)
    params = init_params(key, num_features, num_outputs)
    prepared_f32 = prepare_params(params, num_outputs, use_bf16=False)

    # --- small batch (2 grid steps of 8 rows; exercises megacore split) ------
    batch = 16
    x = jax.random.normal(kx, (batch, num_features), dtype=jnp.float32)
    out, h_output = uci_mlp_forward(x, prepared_f32, num_outputs)
    jax.block_until_ready((out, h_output))
    ref_out, ref_h = _reference_forward(x, params)
    assert out.shape == (batch, num_outputs)
    assert h_output.shape == (batch, HID3)
    assert jnp.allclose(out, ref_out, atol=1e-5, rtol=1e-5)
    assert jnp.allclose(h_output, ref_h, atol=1e-5, rtol=1e-5)

    # --- larger, non-aligned batch (partial last tile: masked boundary store) -
    key, kx2 = jax.random.split(key)
    batch2 = 777
    x2 = jax.random.normal(kx2, (batch2, num_features), dtype=jnp.float32)
    out2, h2 = uci_mlp_forward(x2, prepared_f32, num_outputs)
    jax.block_until_ready((out2, h2))
    ref_out2, ref_h2 = _reference_forward(x2, params)
    assert out2.shape == (batch2, num_outputs) and h2.shape == (batch2, HID3)
    assert jnp.allclose(out2, ref_out2, atol=1e-5, rtol=1e-5)
    assert jnp.allclose(h2, ref_h2, atol=1e-5, rtol=1e-5)

    # --- bf16 weight/activation path (f32 accumulate; recommended on v5e) ----
    prepared_bf16 = prepare_params(params, num_outputs, use_bf16=True)
    out_bf, h_bf = uci_mlp_forward(x2, prepared_bf16, num_outputs, use_bf16=True)
    jax.block_until_ready((out_bf, h_bf))
    assert out_bf.shape == (batch2, num_outputs) and h_bf.shape == (batch2, HID3)
    assert jnp.allclose(out_bf.astype(jnp.float32), ref_out2, atol=1e-1, rtol=1e-1)
    assert jnp.allclose(h_bf.astype(jnp.float32), ref_h2, atol=1e-1, rtol=1e-1)

    print("KERNEL_OK")
</pallas_src>

<mosaic_0001>
module attributes {stable_mosaic.version = 11 : i64} {
  func.func @_mlp_kernel(%arg0: i32, %arg1: memref<8x32xf32, #tpu.memory_space<vmem>>, %arg2: memref<32x512xf32, #tpu.memory_space<vmem>>, %arg3: memref<1x512xf32, #tpu.memory_space<vmem>>, %arg4: memref<512x128xf32, #tpu.memory_space<vmem>>, %arg5: memref<1x128xf32, #tpu.memory_space<vmem>>, %arg6: memref<128x128xf32, #tpu.memory_space<vmem>>, %arg7: memref<1x128xf32, #tpu.memory_space<vmem>>, %arg8: memref<128x128xf32, #tpu.memory_space<vmem>>, %arg9: memref<1x128xf32, #tpu.memory_space<vmem>>, %arg10: memref<8x128xf32, #tpu.memory_space<vmem>>) attributes {dimension_semantics = [#tpu.dimension_semantics<parallel>], iteration_bounds = array<i64: 2>, scalar_prefetch = 0 : i64, scratch_operands = 0 : i64, tpu.core_type = #tpu.core_type<tc>, window_params = [{transform_indices = @transform_0, window_bounds = array<i64: 8, 32>}, {pipeline_mode = #tpu.pipeline_mode<synchronous>, transform_indices = @transform_1, window_bounds = array<i64: 32, 512>}, {pipeline_mode = #tpu.pipeline_mode<synchronous>, transform_indices = @transform_2, window_bounds = array<i64: 1, 512>}, {pipeline_mode = #tpu.pipeline_mode<synchronous>, transform_indices = @transform_3, window_bounds = array<i64: 512, 128>}, {pipeline_mode = #tpu.pipeline_mode<synchronous>, transform_indices = @transform_4, window_bounds = array<i64: 1, 128>}, {pipeline_mode = #tpu.pipeline_mode<synchronous>, transform_indices = @transform_5, window_bounds = array<i64: 128, 128>}, {pipeline_mode = #tpu.pipeline_mode<synchronous>, transform_indices = @transform_6, window_bounds = array<i64: 1, 128>}, {pipeline_mode = #tpu.pipeline_mode<synchronous>, transform_indices = @transform_7, window_bounds = array<i64: 128, 128>}, {pipeline_mode = #tpu.pipeline_mode<synchronous>, transform_indices = @transform_8, window_bounds = array<i64: 1, 128>}, {transform_indices = @transform_9, window_bounds = array<i64: 8, 128>}]} {
    %c0 = arith.constant 0 : index
    %c0_0 = arith.constant 0 : index
    %0 = vector.load %arg1[%c0, %c0_0] : memref<8x32xf32, #tpu.memory_space<vmem>>, vector<8x32xf32>
    %c0_1 = arith.constant 0 : index
    %c0_2 = arith.constant 0 : index
    %1 = vector.load %arg2[%c0_1, %c0_2] : memref<32x512xf32, #tpu.memory_space<vmem>>, vector<32x512xf32>
    %cst = arith.constant dense<0.000000e+00> : vector<8x512xf32>
    %2 = tpu.matmul %0, %1, %cst {dimension_numbers = #tpu.dot_dimension_numbers<[1], [0], [0], [1], [0, 0, 1, 1], [], []>} : vector<8x32xf32>, vector<32x512xf32>, vector<8x512xf32> -> vector<8x512xf32>
    %c0_3 = arith.constant 0 : index
    %c0_4 = arith.constant 0 : index
    %3 = vector.load %arg3[%c0_3, %c0_4] : memref<1x512xf32, #tpu.memory_space<vmem>>, vector<1x512xf32>
    %4 = vector.broadcast %3 : vector<1x512xf32> to vector<8x512xf32>
    %5 = arith.addf %2, %4 : vector<8x512xf32>
    %cst_5 = arith.constant 0.000000e+00 : f32
    %6 = vector.broadcast %cst_5 : f32 to vector<8x512xf32>
    %7 = arith.maximumf %5, %6 : vector<8x512xf32>
    %c0_6 = arith.constant 0 : index
    %c0_7 = arith.constant 0 : index
    %8 = vector.load %arg4[%c0_6, %c0_7] : memref<512x128xf32, #tpu.memory_space<vmem>>, vector<512x128xf32>
    %cst_8 = arith.constant dense<0.000000e+00> : vector<8x128xf32>
    %9 = tpu.matmul %7, %8, %cst_8 {dimension_numbers = #tpu.dot_dimension_numbers<[1], [0], [0], [1], [0, 0, 1, 1], [], []>} : vector<8x512xf32>, vector<512x128xf32>, vector<8x128xf32> -> vector<8x128xf32>
    %c0_9 = arith.constant 0 : index
    %c0_10 = arith.constant 0 : index
    %10 = vector.load %arg5[%c0_9, %c0_10] : memref<1x128xf32, #tpu.memory_space<vmem>>, vector<1x128xf32>
    %11 = vector.broadcast %10 : vector<1x128xf32> to vector<8x128xf32>
    %12 = arith.addf %9, %11 : vector<8x128xf32>
    %cst_11 = arith.constant 0.000000e+00 : f32
    %13 = vector.broadcast %cst_11 : f32 to vector<8x128xf32>
    %14 = arith.maximumf %12, %13 : vector<8x128xf32>
    %c0_12 = arith.constant 0 : index
    %c0_13 = arith.constant 0 : index
    %15 = vector.load %arg6[%c0_12, %c0_13] : memref<128x128xf32, #tpu.memory_space<vmem>>, vector<128x128xf32>
    %cst_14 = arith.constant dense<0.000000e+00> : vector<8x128xf32>
    %16 = tpu.matmul %14, %15, %cst_14 {dimension_numbers = #tpu.dot_dimension_numbers<[1], [0], [0], [1], [0, 0, 1, 1], [], []>} : vector<8x128xf32>, vector<128x128xf32>, vector<8x128xf32> -> vector<8x128xf32>
    %c0_15 = arith.constant 0 : index
    %c0_16 = arith.constant 0 : index
    %17 = vector.load %arg7[%c0_15, %c0_16] : memref<1x128xf32, #tpu.memory_space<vmem>>, vector<1x128xf32>
    %18 = vector.broadcast %17 : vector<1x128xf32> to vector<8x128xf32>
    %19 = arith.addf %16, %18 : vector<8x128xf32>
    %cst_17 = arith.constant 0.000000e+00 : f32
    %20 = vector.broadcast %cst_17 : f32 to vector<8x128xf32>
    %21 = arith.maximumf %19, %20 : vector<8x128xf32>
    %c0_18 = arith.constant 0 : index
    %c0_19 = arith.constant 0 : index
    %22 = vector.load %arg8[%c0_18, %c0_19] : memref<128x128xf32, #tpu.memory_space<vmem>>, vector<128x128xf32>
    %cst_20 = arith.constant dense<0.000000e+00> : vector<8x128xf32>
    %23 = tpu.matmul %21, %22, %cst_20 {dimension_numbers = #tpu.dot_dimension_numbers<[1], [0], [0], [1], [0, 0, 1, 1], [], []>} : vector<8x128xf32>, vector<128x128xf32>, vector<8x128xf32> -> vector<8x128xf32>
    %c0_21 = arith.constant 0 : index
    %c0_22 = arith.constant 0 : index
    %24 = vector.load %arg9[%c0_21, %c0_22] : memref<1x128xf32, #tpu.memory_space<vmem>>, vector<1x128xf32>
    %25 = vector.broadcast %24 : vector<1x128xf32> to vector<8x128xf32>
    %26 = arith.addf %23, %25 : vector<8x128xf32>
    %c0_23 = arith.constant 0 : index
    %c0_24 = arith.constant 0 : index
    %27 = vector.load %arg10[%c0_23, %c0_24] : memref<8x128xf32, #tpu.memory_space<vmem>>, vector<8x128xf32>
    tpu.vector_store %arg10[%c0_23, %c0_24], %26 {strides = array<i32>} : memref<8x128xf32, #tpu.memory_space<vmem>>, vector<8x128xf32>,
    return
  }
  func.func @transform_0(%arg0: i32) -> (i32, i32) {
    %c0_i32 = arith.constant 0 : i32
    %c0_i32_0 = arith.constant 0 : i32
    return %arg0, %c0_i32 : i32, i32
  }
  func.func @transform_1(%arg0: i32) -> (i32, i32) {
    %c0_i32 = arith.constant 0 : i32
    %c0_i32_0 = arith.constant 0 : i32
    %c0_i32_1 = arith.constant 0 : i32
    return %c0_i32, %c0_i32_0 : i32, i32
  }
  func.func @transform_2(%arg0: i32) -> (i32, i32) {
    %c0_i32 = arith.constant 0 : i32
    %c0_i32_0 = arith.constant 0 : i32
    %c0_i32_1 = arith.constant 0 : i32
    return %c0_i32, %c0_i32_0 : i32, i32
  }
  func.func @transform_3(%arg0: i32) -> (i32, i32) {
    %c0_i32 = arith.constant 0 : i32
    %c0_i32_0 = arith.constant 0 : i32
    %c0_i32_1 = arith.constant 0 : i32
    return %c0_i32, %c0_i32_0 : i32, i32
  }
  func.func @transform_4(%arg0: i32) -> (i32, i32) {
    %c0_i32 = arith.constant 0 : i32
    %c0_i32_0 = arith.constant 0 : i32
    %c0_i32_1 = arith.constant 0 : i32
    return %c0_i32, %c0_i32_0 : i32, i32
  }
  func.func @transform_5(%arg0: i32) -> (i32, i32) {
    %c0_i32 = arith.constant 0 : i32
    %c0_i32_0 = arith.constant 0 : i32
    %c0_i32_1 = arith.constant 0 : i32
    return %c0_i32, %c0_i32_0 : i32, i32
  }
  func.func @transform_6(%arg0: i32) -> (i32, i32) {
    %c0_i32 = arith.constant 0 : i32
    %c0_i32_0 = arith.constant 0 : i32
    %c0_i32_1 = arith.constant 0 : i32
    return %c0_i32, %c0_i32_0 : i32, i32
  }
  func.func @transform_7(%arg0: i32) -> (i32, i32) {
    %c0_i32 = arith.constant 0 : i32
    %c0_i32_0 = arith.constant 0 : i32
    %c0_i32_1 = arith.constant 0 : i32
    return %c0_i32, %c0_i32_0 : i32, i32
  }
  func.func @transform_8(%arg0: i32) -> (i32, i32) {
    %c0_i32 = arith.constant 0 : i32
    %c0_i32_0 = arith.constant 0 : i32
    %c0_i32_1 = arith.constant 0 : i32
    return %c0_i32, %c0_i32_0 : i32, i32
  }
  func.func @transform_9(%arg0: i32) -> (i32, i32) {
    %c0_i32 = arith.constant 0 : i32
    %c0_i32_0 = arith.constant 0 : i32
    return %arg0, %c0_i32 : i32, i32
  }
}

</mosaic_0001>

<llo_original>
// kernel: uci_mlp_forward.1
$region0: #{uci_mlp_forward.1}
  #allocation0 [shape = 'u32[]', space=smem, size = 0x4, offset = 0x4, fixed_abs, tag = 'smem constant byte address 0x4 - core index']
  #allocation1 [shape = 'u32[144,128]{1,0:T(1,128)}', space=vmem, size = 0x12000, scoped, tag = 'internal scratch']
  %s0 = inlined_call_operand.hbm [shape: f32[16,32], index: 0, kind: input, shape index: {}]
  %s1 = inlined_call_operand.hbm [shape: f32[32,512], index: 1, kind: input, shape index: {}]
  %s2 = inlined_call_operand.vmem [shape: f32[1,512], index: 2, kind: input, shape index: {}]
  %s3 = inlined_call_operand.hbm [shape: f32[512,128], index: 3, kind: input, shape index: {}]
  %s4 = inlined_call_operand.vmem [shape: f32[1,128], index: 4, kind: input, shape index: {}]
  %s5 = inlined_call_operand.hbm [shape: f32[128,128], index: 5, kind: input, shape index: {}]
  %s6 = inlined_call_operand.vmem [shape: f32[1,128], index: 6, kind: input, shape index: {}]
  %s7 = inlined_call_operand.hbm [shape: f32[128,128], index: 7, kind: input, shape index: {}]
  %s8 = inlined_call_operand.vmem [shape: f32[1,128], index: 8, kind: input, shape index: {}]
  %s9 = inlined_call_operand.vmem [shape: f32[16,128], index: 9, kind: output, shape index: {}]
  %s10 = sld [smem:[#allocation0]]
  $region89: #{uci_mlp_forward.1} parent=0
    _
  %s12 = ssub.s32 1, %s10
  %s13 = scalar_select 0, %s12, %s10
  $region1: #{uci_mlp_forward.1} parent=0
    #allocation2 [shape = 'u8[8192]{0}', space=vmem, size = 0x2000, scoped, tag = 'input window, operand 0']
    #allocation3 [shape = 's32[2]{0}', space=sflag, size = 0x8, scoped, tag = 'scoped memory for uci_mlp_forward.1']
    #allocation4 [shape = 'u8[65536]{0}', space=vmem, size = 0x10000, scoped, tag = 'input window, operand 1, single buffered']
    #allocation5 [shape = 's32[1]{0}', space=sflag, size = 0x4, scoped, tag = 'scoped memory for uci_mlp_forward.1']
    #allocation6 [shape = 'u8[262144]{0}', space=vmem, size = 0x40000, scoped, tag = 'input window, operand 3, single buffered']
    #allocation7 [shape = 'u8[65536]{0}', space=vmem, size = 0x10000, scoped, tag = 'input window, operand 5, single buffered']
    #allocation8 [shape = 's32[1]{0}', space=sflag, size = 0x4, scoped, tag = 'scoped memory for uci_mlp_forward.1']
    #allocation9 [shape = 'u8[65536]{0}', space=vmem, size = 0x10000, scoped, tag = 'input window, operand 7, single buffered']
    %14 = vsyncpa [#allocation3], 0
    %s15 = scalar_lea.sflag [#allocation3], 1
    %16 = vsyncpa %s15, 0
    %17 = vsyncpa [#allocation5], 0
    %18 = vsyncpa [#allocation8], 0
    loop: start=0, step=1, limit=4
    $region2: #{uci_mlp_forward.1} parent=1 // loop_pre_header
      _
    $region3: #{uci_mlp_forward.1} parent=1 // loop_header
      %s20 = sphi 0, %s24
      %p21 = scmp.ge.s32.totalorder %s20, 4
      %s30 = sphi 0, %s32
      %s33 = sphi 0, %s30
      %s34 = sphi 0, %s33
      %s50 = sphi 0, %s34
      %s54 = sphi 0, %s54
      %s56 = sphi 0, %s54
      %s57 = sphi 0, %s56
      %s71 = sphi 0, %s57
      %s75 = sphi 0, %s75
      %s77 = sphi 0, %s75
      %s78 = sphi 0, %s77
      %s92 = sphi 0, %s78
      %s96 = sphi 0, %s96
      %s98 = sphi 0, %s96
      %s99 = sphi 0, %s98
      %s113 = sphi 0, %s99
      %s117 = sphi 0, %s117
      %s119 = sphi 0, %s117
      %s120 = sphi 0, %s119
      %s134 = sphi 0, %s120
      %s138 = sphi 0, %s138
      %s140 = sphi 0, %s138
      %s141 = sphi 0, %s140
      %s155 = sphi 0, %s141
      %s159 = sphi 0, %s159
      %s161 = sphi 0, %s159
      %s162 = sphi 0, %s161
      %s176 = sphi 0, %s162
      %s180 = sphi 0, %s180
      %s182 = sphi 0, %s180
      %s183 = sphi 0, %s182
      %s197 = sphi 0, %s183
      %s201 = sphi 0, %s201
      %s203 = sphi 0, %s201
      %s204 = sphi 0, %s203
      %s218 = sphi 0, %s204
      %s224 = sphi 0, %s226
      %s227 = sphi 0, %s224
      %s228 = sphi 0, %s227
      %s244 = sphi 0, %s228
    $region4: #{uci_mlp_forward.1} parent=1 // loop_header_branch
      %23 = sbr.rel (%p21) target = $region8
    $region5: #{uci_mlp_forward.1} parent=1 // loop_body
      %s25 = ssub.s32 %s20, 1
      %s26 = ssub.s32 %s20, 2
      %s27 = sadd.s32 %s20, 1
      %s28 = ssub.s32 %s20, %s27
      %p29 = scmp.eq.s32.totalorder %s28, 0
      %s31 = sadd.s32 %s30, 1
      %s32 = scalar_select %p29, %s30, %s31
      %p35 = pneg %p29
      %p36 = scmp.eq.s32.totalorder %s20, 1
      %p37 = por %p35, %p36
      %p38 = scmp.ne.s32.totalorder %s30, %s33
      %p39 = scmp.eq.s32.totalorder %s20, 0
      %p40 = por %p38, %p39
      %p41 = scmp.ne.s32.totalorder %s30, %s33
      %p42 = scmp.eq.s32.totalorder %s25, 1
      %p43 = por %p41, %p42
      %p44 = scmp.ne.s32.totalorder %s33, %s34
      %p45 = scmp.eq.s32.totalorder %s25, 0
      %p46 = por %p44, %p45
      %p47 = scmp.ne.s32.totalorder %s33, %s34
      %p48 = scmp.eq.s32.totalorder %s26, 1
      %p49 = por %p47, %p48
      %p51 = scmp.ne.s32.totalorder %s34, %s50
      %p52 = scmp.eq.s32.totalorder %s26, 0
      %p53 = por %p51, %p52
      %s55 = sadd.s32 %s54, 1
      %p58 = scmp.eq.s32.totalorder %s20, 1
      %p59 = scmp.ne.s32.totalorder %s54, %s56
      %p60 = scmp.eq.s32.totalorder %s20, 0
      %p61 = por %p59, %p60
      %p62 = scmp.ne.s32.totalorder %s54, %s56
      %p63 = scmp.eq.s32.totalorder %s25, 1
      %p64 = por %p62, %p63
      %p65 = scmp.ne.s32.totalorder %s56, %s57
      %p66 = scmp.eq.s32.totalorder %s25, 0
      %p67 = por %p65, %p66
      %p68 = scmp.ne.s32.totalorder %s56, %s57
      %p69 = scmp.eq.s32.totalorder %s26, 1
      %p70 = por %p68, %p69
      %p72 = scmp.ne.s32.totalorder %s57, %s71
      %p73 = scmp.eq.s32.totalorder %s26, 0
      %p74 = por %p72, %p73
      %s76 = sadd.s32 %s75, 1
      %p79 = scmp.eq.s32.totalorder %s20, 1
      %p80 = scmp.ne.s32.totalorder %s75, %s77
      %p81 = scmp.eq.s32.totalorder %s20, 0
      %p82 = por %p80, %p81
      %p83 = scmp.ne.s32.totalorder %s75, %s77
      %p84 = scmp.eq.s32.totalorder %s25, 1
      %p85 = por %p83, %p84
      %p86 = scmp.ne.s32.totalorder %s77, %s78
      %p87 = scmp.eq.s32.totalorder %s25, 0
      %p88 = por %p86, %p87
      %p89 = scmp.ne.s32.totalorder %s77, %s78
      %p90 = scmp.eq.s32.totalorder %s26, 1
      %p91 = por %p89, %p90
      %p93 = scmp.ne.s32.totalorder %s78, %s92
      %p94 = scmp.eq.s32.totalorder %s26, 0
      %p95 = por %p93, %p94
      %s97 = sadd.s32 %s96, 1
      %p100 = scmp.eq.s32.totalorder %s20, 1
      %p101 = scmp.ne.s32.totalorder %s96, %s98
      %p102 = scmp.eq.s32.totalorder %s20, 0
      %p103 = por %p101, %p102
      %p104 = scmp.ne.s32.totalorder %s96, %s98
      %p105 = scmp.eq.s32.totalorder %s25, 1
      %p106 = por %p104, %p105
      %p107 = scmp.ne.s32.totalorder %s98, %s99
      %p108 = scmp.eq.s32.totalorder %s25, 0
      %p109 = por %p107, %p108
      %p110 = scmp.ne.s32.totalorder %s98, %s99
      %p111 = scmp.eq.s32.totalorder %s26, 1
      %p112 = por %p110, %p111
      %p114 = scmp.ne.s32.totalorder %s99, %s113
      %p115 = scmp.eq.s32.totalorder %s26, 0
      %p116 = por %p114, %p115
      %s118 = sadd.s32 %s117, 1
      %p121 = scmp.eq.s32.totalorder %s20, 1
      %p122 = scmp.ne.s32.totalorder %s117, %s119
      %p123 = scmp.eq.s32.totalorder %s20, 0
      %p124 = por %p122, %p123
      %p125 = scmp.ne.s32.totalorder %s117, %s119
      %p126 = scmp.eq.s32.totalorder %s25, 1
      %p127 = por %p125, %p126
      %p128 = scmp.ne.s32.totalorder %s119, %s120
      %p129 = scmp.eq.s32.totalorder %s25, 0
      %p130 = por %p128, %p129
      %p131 = scmp.ne.s32.totalorder %s119, %s120
      %p132 = scmp.eq.s32.totalorder %s26, 1
      %p133 = por %p131, %p132
      %p135 = scmp.ne.s32.totalorder %s120, %s134
      %p136 = scmp.eq.s32.totalorder %s26, 0
      %p137 = por %p135, %p136
      %s139 = sadd.s32 %s138, 1
      %p142 = scmp.eq.s32.totalorder %s20, 1
      %p143 = scmp.ne.s32.totalorder %s138, %s140
      %p144 = scmp.eq.s32.totalorder %s20, 0
      %p145 = por %p143, %p144
      %p146 = scmp.ne.s32.totalorder %s138, %s140
      %p147 = scmp.eq.s32.totalorder %s25, 1
      %p148 = por %p146, %p147
      %p149 = scmp.ne.s32.totalorder %s140, %s141
      %p150 = scmp.eq.s32.totalorder %s25, 0
      %p151 = por %p149, %p150
      %p152 = scmp.ne.s32.totalorder %s140, %s141
      %p153 = scmp.eq.s32.totalorder %s26, 1
      %p154 = por %p152, %p153
      %p156 = scmp.ne.s32.totalorder %s141, %s155
      %p157 = scmp.eq.s32.totalorder %s26, 0
      %p158 = por %p156, %p157
      %s160 = sadd.s32 %s159, 1
      %p163 = scmp.eq.s32.totalorder %s20, 1
      %p164 = scmp.ne.s32.totalorder %s159, %s161
      %p165 = scmp.eq.s32.totalorder %s20, 0
      %p166 = por %p164, %p165
      %p167 = scmp.ne.s32.totalorder %s159, %s161
      %p168 = scmp.eq.s32.totalorder %s25, 1
      %p169 = por %p167, %p168
      %p170 = scmp.ne.s32.totalorder %s161, %s162
      %p171 = scmp.eq.s32.totalorder %s25, 0
      %p172 = por %p170, %p171
      %p173 = scmp.ne.s32.totalorder %s161, %s162
      %p174 = scmp.eq.s32.totalorder %s26, 1
      %p175 = por %p173, %p174
      %p177 = scmp.ne.s32.totalorder %s162, %s176
      %p178 = scmp.eq.s32.totalorder %s26, 0
      %p179 = por %p177, %p178
      %s181 = sadd.s32 %s180, 1
      %p184 = scmp.eq.s32.totalorder %s20, 1
      %p185 = scmp.ne.s32.totalorder %s180, %s182
      %p186 = scmp.eq.s32.totalorder %s20, 0
      %p187 = por %p185, %p186
      %p188 = scmp.ne.s32.totalorder %s180, %s182
      %p189 = scmp.eq.s32.totalorder %s25, 1
      %p190 = por %p188, %p189
      %p191 = scmp.ne.s32.totalorder %s182, %s183
      %p192 = scmp.eq.s32.totalorder %s25, 0
      %p193 = por %p191, %p192
      %p194 = scmp.ne.s32.totalorder %s182, %s183
      %p195 = scmp.eq.s32.totalorder %s26, 1
      %p196 = por %p194, %p195
      %p198 = scmp.ne.s32.totalorder %s183, %s197
      %p199 = scmp.eq.s32.totalorder %s26, 0
      %p200 = por %p198, %p199
      %s202 = sadd.s32 %s201, 1
      %p205 = scmp.eq.s32.totalorder %s20, 1
      %p206 = scmp.ne.s32.totalorder %s201, %s203
      %p207 = scmp.eq.s32.totalorder %s20, 0
      %p208 = por %p206, %p207
      %p209 = scmp.ne.s32.totalorder %s201, %s203
      %p210 = scmp.eq.s32.totalorder %s25, 1
      %p211 = por %p209, %p210
      %p212 = scmp.ne.s32.totalorder %s203, %s204
      %p213 = scmp.eq.s32.totalorder %s25, 0
      %p214 = por %p212, %p213
      %p215 = scmp.ne.s32.totalorder %s203, %s204
      %p216 = scmp.eq.s32.totalorder %s26, 1
      %p217 = por %p215, %p216
      %p219 = scmp.ne.s32.totalorder %s204, %s218
      %p220 = scmp.eq.s32.totalorder %s26, 0
      %p221 = por %p219, %p220
      %s222 = ssub.s32 %s20, %s27
      %p223 = scmp.eq.s32.totalorder %s222, 0
      %s225 = sadd.s32 %s224, 1
      %s226 = scalar_select %p223, %s224, %s225
      %p229 = pneg %p223
      %p230 = scmp.eq.s32.totalorder %s20, 1
      %p231 = por %p229, %p230
      %p232 = scmp.ne.s32.totalorder %s224, %s227
      %p233 = scmp.eq.s32.totalorder %s20, 0
      %p234 = por %p232, %p233
      %p235 = scmp.ne.s32.totalorder %s224, %s227
      %p236 = scmp.eq.s32.totalorder %s25, 1
      %p237 = por %p235, %p236
      %p238 = scmp.ne.s32.totalorder %s227, %s228
      %p239 = scmp.eq.s32.totalorder %s25, 0
      %p240 = por %p238, %p239
      %p241 = scmp.ne.s32.totalorder %s227, %s228
      %p242 = scmp.eq.s32.totalorder %s26, 1
      %p243 = por %p241, %p242
      %p245 = scmp.ne.s32.totalorder %s228, %s244
      %p246 = scmp.eq.s32.totalorder %s26, 0
      %p247 = por %p245, %p246
      %p248 = scmp.le.s32.totalorder 1, %s20
      %p249 = scmp.lt.s32.totalorder %s20, 3
      %p250 = pnand %p248, %p249
      %p251 = pneg %p250
      // Predicated region
      $region9: #{uci_mlp_forward.1} parent=5 // pred_check
        _
      $region10: #{uci_mlp_forward.1} parent=5 // pred_check_branch
        %253 = sbr.rel (%p250) target = $region12
      $region11: #{uci_mlp_forward.1} parent=5 // pred_region
        %s254 = ssub.s32 %s20, 1
        // Predicated region
        $region13: #{uci_mlp_forward.1} parent=11 // pred_check
          %p255 = pneg %p67
        $region14: #{uci_mlp_forward.1} parent=11 // pred_check_branch
          %257 = sbr.rel (%p255) target = $region16
        $region15: #{uci_mlp_forward.1} parent=11 // pred_region
          %s259 = ssub.s32 2048, 2048
          %260 = vsyncadd [#allocation5], %s259
          %s261 = sshll.u32 [#allocation4], 4
          %s262 = int_to_ptr.vmem [resolvable:$true] %s261
          %267 = dma.hbm_to_vmem [thread:$0]  %s1, 2048, %s262, [#allocation5], 512, 512, 32
        $region16: #{uci_mlp_forward.1} parent=11 // pred_fallthru
          _
        // Predicated region
        $region17: #{uci_mlp_forward.1} parent=11 // pred_check
          %p268 = pneg %p88
        $region18: #{uci_mlp_forward.1} parent=11 // pred_check_branch
          %270 = sbr.rel (%p268) target = $region20
        $region19: #{uci_mlp_forward.1} parent=11 // pred_region
          _
        $region20: #{uci_mlp_forward.1} parent=11 // pred_fallthru
          _
        // Predicated region
        $region21: #{uci_mlp_forward.1} parent=11 // pred_check
          %p271 = pneg %p109
        $region22: #{uci_mlp_forward.1} parent=11 // pred_check_branch
          %273 = sbr.rel (%p271) target = $region24
        $region23: #{uci_mlp_forward.1} parent=11 // pred_region
          %s275 = ssub.s32 8192, 8192
          %276 = vsyncadd [#allocation5], %s275
          %s277 = sshll.u32 [#allocation6], 4
          %s278 = int_to_ptr.vmem [resolvable:$true] %s277
          %283 = dma.hbm_to_vmem [thread:$0]  %s3, 8192, %s278, [#allocation5], 128, 128, 8
        $region24: #{uci_mlp_forward.1} parent=11 // pred_fallthru
          _
        // Predicated region
        $region25: #{uci_mlp_forward.1} parent=11 // pred_check
          %p284 = pneg %p130
        $region26: #{uci_mlp_forward.1} parent=11 // pred_check_branch
          %286 = sbr.rel (%p284) target = $region28
        $region27: #{uci_mlp_forward.1} parent=11 // pred_region
          _
        $region28: #{uci_mlp_forward.1} parent=11 // pred_fallthru
          _
        // Predicated region
        $region29: #{uci_mlp_forward.1} parent=11 // pred_check
          %p287 = pneg %p151
        $region30: #{uci_mlp_forward.1} parent=11 // pred_check_branch
          %289 = sbr.rel (%p287) target = $region32
        $region31: #{uci_mlp_forward.1} parent=11 // pred_region
          %s291 = ssub.s32 2048, 2048
          %292 = vsyncadd [#allocation8], %s291
          %s293 = sshll.u32 [#allocation7], 4
          %s294 = int_to_ptr.vmem [resolvable:$true] %s293
          %299 = dma.hbm_to_vmem [thread:$0]  %s5, 2048, %s294, [#allocation8], 128, 128, 8
        $region32: #{uci_mlp_forward.1} parent=11 // pred_fallthru
          _
        // Predicated region
        $region33: #{uci_mlp_forward.1} parent=11 // pred_check
          %p300 = pneg %p172
        $region34: #{uci_mlp_forward.1} parent=11 // pred_check_branch
          %302 = sbr.rel (%p300) target = $region36
        $region35: #{uci_mlp_forward.1} parent=11 // pred_region
          _
        $region36: #{uci_mlp_forward.1} parent=11 // pred_fallthru
          _
        // Predicated region
        $region37: #{uci_mlp_forward.1} parent=11 // pred_check
          %p303 = pneg %p193
        $region38: #{uci_mlp_forward.1} parent=11 // pred_check_branch
          %305 = sbr.rel (%p303) target = $region40
        $region39: #{uci_mlp_forward.1} parent=11 // pred_region
          %s307 = ssub.s32 2048, 2048
          %308 = vsyncadd [#allocation8], %s307
          %s309 = sshll.u32 [#allocation9], 4
          %s310 = int_to_ptr.vmem [resolvable:$true] %s309
          %315 = dma.hbm_to_vmem [thread:$0]  %s7, 2048, %s310, [#allocation8], 128, 128, 8
        $region40: #{uci_mlp_forward.1} parent=11 // pred_fallthru
          _
        // Predicated region
        $region41: #{uci_mlp_forward.1} parent=11 // pred_check
          %p316 = pneg %p214
        $region42: #{uci_mlp_forward.1} parent=11 // pred_check_branch
          %318 = sbr.rel (%p316) target = $region44
        $region43: #{uci_mlp_forward.1} parent=11 // pred_region
          _
        $region44: #{uci_mlp_forward.1} parent=11 // pred_fallthru
          _
      $region12: #{uci_mlp_forward.1} parent=5 // pred_fallthru
        _
      %p319 = scmp.lt.s32.totalorder %s20, 2
      // Predicated region
      $region45: #{uci_mlp_forward.1} parent=5 // pred_check
        %p320 = pneg %p319
      $region46: #{uci_mlp_forward.1} parent=5 // pred_check_branch
        %322 = sbr.rel (%p320) target = $region48
      $region47: #{uci_mlp_forward.1} parent=5 // pred_region
        // Predicated region
        $region49: #{uci_mlp_forward.1} parent=47 // pred_check
          %p323 = pneg %p40
        $region50: #{uci_mlp_forward.1} parent=47 // pred_check_branch
          %325 = sbr.rel (%p323) target = $region52
        $region51: #{uci_mlp_forward.1} parent=47 // pred_region
          %s326 = sand.u32 %s30, 1
          %s327 = scalar_lea.sflag [#allocation3], %s326
          %s328 = sand.u32 %s30, 1
          %s329 = smul.addr %s328, 8
          %s330 = scalar_lea.vmem [#allocation2], %s329
          %s332 = ssub.s32 128, 128
          %333 = vsyncadd %s327, %s332
          %s334 = smul.addr %s20, 128
          %s335 = scalar_lea.hbm %s0, %s334
          %s337 = sshll.u32 %s330, 4
          %s338 = int_to_ptr.vmem [resolvable:$true] %s337
          %340 = dma.hbm_to_vmem [thread:$0]  %s335, 128, %s338, %s327
        $region52: #{uci_mlp_forward.1} parent=47 // pred_fallthru
          _
      $region48: #{uci_mlp_forward.1} parent=5 // pred_fallthru
        _
      %p341 = scmp.le.s32.totalorder 1, %s20
      %p342 = scmp.lt.s32.totalorder %s20, 3
      %p343 = pnand %p341, %p342
      %p344 = pneg %p343
      // Predicated region
      $region53: #{uci_mlp_forward.1} parent=5 // pred_check
        _
      $region54: #{uci_mlp_forward.1} parent=5 // pred_check_branch
        %346 = sbr.rel (%p343) target = $region56
      $region55: #{uci_mlp_forward.1} parent=5 // pred_region
        %s347 = ssub.s32 %s20, 1
        %s348 = sand.u32 %s33, 1
        %s349 = scalar_lea.sflag [#allocation3], %s348
        %s350 = sand.u32 %s33, 1
        %s351 = smul.addr %s350, 8
        %s352 = scalar_lea.vmem [#allocation2], %s351
        // Predicated region
        $region57: #{uci_mlp_forward.1} parent=55 // pred_check
          %p353 = pneg %p46
        $region58: #{uci_mlp_forward.1} parent=55 // pred_check_branch
          %355 = sbr.rel (%p353) target = $region60
        $region59: #{uci_mlp_forward.1} parent=55 // pred_region
          %356 = dma.done %s349, 128
        $region60: #{uci_mlp_forward.1} parent=55 // pred_fallthru
          _
        // Predicated region
        $region61: #{uci_mlp_forward.1} parent=55 // pred_check
          %p357 = pneg %p67
        $region62: #{uci_mlp_forward.1} parent=55 // pred_check_branch
          %359 = sbr.rel (%p357) target = $region64
        $region63: #{uci_mlp_forward.1} parent=55 // pred_region
          %360 = dma.done [#allocation5], 2048
        $region64: #{uci_mlp_forward.1} parent=55 // pred_fallthru
          _
        // Predicated region
        $region65: #{uci_mlp_forward.1} parent=55 // pred_check
          %p361 = pneg %p109
        $region66: #{uci_mlp_forward.1} parent=55 // pred_check_branch
          %363 = sbr.rel (%p361) target = $region68
        $region67: #{uci_mlp_forward.1} parent=55 // pred_region
          %364 = dma.done [#allocation5], 8192
        $region68: #{uci_mlp_forward.1} parent=55 // pred_fallthru
          _
        // Predicated region
        $region69: #{uci_mlp_forward.1} parent=55 // pred_check
          %p365 = pneg %p151
        $region70: #{uci_mlp_forward.1} parent=55 // pred_check_branch
          %367 = sbr.rel (%p365) target = $region72
        $region71: #{uci_mlp_forward.1} parent=55 // pred_region
          %368 = dma.done [#allocation8], 2048
        $region72: #{uci_mlp_forward.1} parent=55 // pred_fallthru
          _
        // Predicated region
        $region73: #{uci_mlp_forward.1} parent=55 // pred_check
          %p369 = pneg %p193
        $region74: #{uci_mlp_forward.1} parent=55 // pred_check_branch
          %371 = sbr.rel (%p369) target = $region76
        $region75: #{uci_mlp_forward.1} parent=55 // pred_region
          %372 = dma.done [#allocation8], 2048
        $region76: #{uci_mlp_forward.1} parent=55 // pred_fallthru
          _
        %s373 = sand.u32 %s33, 1
        %s374 = scalar_lea.sflag [#allocation3], %s373
        %s375 = sand.u32 %s33, 1
        %s376 = smul.addr %s375, 8
        %s377 = scalar_lea.vmem [#allocation2], %s376
        %p378 = pneg %p46
        %p379 = pneg %p43
        %p380 = pneg %p67
        %p381 = pneg %p64
        %p382 = pneg %p88
        %p383 = pneg %p85
        %p384 = pneg %p109
        %p385 = pneg %p106
        %p386 = pneg %p130
        %p387 = pneg %p127
        %p388 = pneg %p151
        %p389 = pneg %p148
        %p390 = pneg %p172
        %p391 = pneg %p169
        %p392 = pneg %p193
        %p393 = pneg %p190
        %p394 = pneg %p214
        %p395 = pneg %p211
        %p396 = pneg %p240
        %p397 = pneg %p237
        %p398 = scmp.lt.s32.totalorder %s25, 1
        %s399 = scalar_select %p398, %s25, 1
        %s400 = smul.addr %s399, 8
        %s401 = scalar_lea.vmem %s9, %s400
        %p402 = scmp.lt.s32.totalorder %s25, 1
        %s403 = scalar_select %p402, %s25, 1
        %s404 = smul.addr %s403, 8
        %s405 = scalar_lea.vmem %s9, %s404
        %v406 = vld [vmem:[%s352] sm:$0xff]
        %v407 = vld [vmem:[#allocation4] sm:$0xff]
        %v408 = vld [vmem:[#allocation4 + $0x8] sm:$0xff]
        %v409 = vld [vmem:[#allocation4 + $0x10] sm:$0xff]
        %v410 = vld [vmem:[#allocation4 + $0x18] sm:$0xff]
        %v411 = vld [vmem:[#allocation4 + $0x20] sm:$0xff]
        %v412 = vld [vmem:[#allocation4 + $0x28] sm:$0xff]
        %v413 = vld [vmem:[#allocation4 + $0x30] sm:$0xff]
        %v414 = vld [vmem:[#allocation4 + $0x38] sm:$0xff]
        %v415 = vld [vmem:[#allocation4 + $0x40] sm:$0xff]
        %v416 = vld [vmem:[#allocation4 + $0x48] sm:$0xff]
        %v417 = vld [vmem:[#allocation4 + $0x50] sm:$0xff]
        %v418 = vld [vmem:[#allocation4 + $0x58] sm:$0xff]
        %v419 = vld [vmem:[#allocation4 + $0x60] sm:$0xff]
        %v420 = vld [vmem:[#allocation4 + $0x68] sm:$0xff]
        %v421 = vld [vmem:[#allocation4 + $0x70] sm:$0xff]
        %v422 = vld [vmem:[#allocation4 + $0x78] sm:$0xff]
        %v423 = vld [vmem:[%s2] sm:$0xf]
        %v425 = vlaneseq
        %v426 = vshrl.u32 %v425, 7
        %v427 = vsub.s32 0, %v426
        %v428 = vrot.slane %v423, %v427
        %v429 = vlaneseq
        %v430 = vshrl.u32 %v429, 7
        %v431 = vsub.s32 1, %v430
        %v432 = vrot.slane %v423, %v431
        %v433 = vlaneseq
        %v434 = vshrl.u32 %v433, 7
        %v435 = vsub.s32 2, %v434
        %v436 = vrot.slane %v423, %v435
        %v437 = vlaneseq
        %v438 = vshrl.u32 %v437, 7
        %v439 = vsub.s32 3, %v438
        %v440 = vrot.slane %v423, %v439
        %vm445 = vcmask 261120
        %v447 = vsel %vm445, %v406, 0
        %449 = vmatprep.subr.mxu0 %v408
        %450 = vmatpush1.msra.mxu0 %v407
        %451 = vmatprep.subr.mxu0 %v412
        %452 = vmatpush1.msra.mxu0 %v411
        %453 = vmatprep.subr.mxu0 %v416
        %454 = vmatpush1.msra.mxu0 %v415
        %455 = vmatprep.subr.mxu0 %v420
        %456 = vmatpush1.msra.mxu0 %v419
        %457 = vmatprep.subr.mxu0 0.0
        %458 = vmatpush1.msra.mxu0 0.0
        %459 = vmatprep.subr.mxu0 0.0
        %460 = vmatpush1.msra.mxu0 0.0
        %461 = vmatprep.subr.mxu0 0.0
        %462 = vmatpush1.msra.mxu0 0.0
        %463 = vmatprep.subr.mxu0 0.0
        %464 = vmatpush1.msra.mxu0 0.0
        %465 = vmatprep.subr.mxu0 0.0
        %466 = vmatpush1.msra.mxu0 0.0
        %467 = vmatprep.subr.mxu0 0.0
        %468 = vmatpush1.msra.mxu0 0.0
        %469 = vmatprep.subr.mxu0 0.0
        %470 = vmatpush1.msra.mxu0 0.0
        %471 = vmatprep.subr.mxu0 0.0
        %472 = vmatpush1.msra.mxu0 0.0
        %473 = vmatprep.subr.mxu0 0.0
        %474 = vmatpush1.msra.mxu0 0.0
        %475 = vmatprep.subr.mxu0 0.0
        %476 = vmatpush1.msra.mxu0 0.0
        %477 = vmatprep.subr.mxu0 0.0
        %478 = vmatpush1.msra.mxu0 0.0
        %479 = vmatprep.subr.mxu0 0.0
        %480 = vmatpush1.msra.mxu0 0.0
        %481 = vmatprep.subr.mxu0 0.0
        %482 = vmatpush1.msra.mxu0 0.0
        %483 = vmatprep.subr.mxu0 0.0
        %484 = vmatpush1.msra.mxu0 0.0
        %485 = vmatprep.subr.mxu0 0.0
        %486 = vmatpush1.msra.mxu0 0.0
        %487 = vmatprep.subr.mxu0 0.0
        %488 = vmatpush1.msra.mxu0 0.0
        %489 = vmatprep.subr.mxu0 0.0
        %490 = vmatpush1.msra.mxu0 0.0
        %491 = vmatprep.subr.mxu0 0.0
        %492 = vmatpush1.msra.mxu0 0.0
        %493 = vmatprep.subr.mxu0 0.0
        %494 = vmatpush1.msra.mxu0 0.0
        %495 = vmatprep.subr.mxu0 0.0
        %496 = vmatpush1.msra.mxu0 0.0
        %497 = vmatprep.subr.mxu0 0.0
        %498 = vmatpush1.msra.mxu0 0.0
        %499 = vmatprep.subr.mxu0 0.0
        %500 = vmatpush1.msra.mxu0 0.0
        %501 = vmatprep.subr.mxu0 0.0
        %502 = vmatpush1.msra.mxu0 0.0
        %503 = vmatprep.subr.mxu0 0.0
        %504 = vmatpush1.msra.mxu0 0.0
        %505 = vmatprep.subr.mxu0 0.0
        %506 = vmatpush1.msra.mxu0 0.0
        %507 = vmatprep.subr.mxu0 0.0
        %508 = vmatpush1.msra.mxu0 0.0
        %509 = vmatprep.subr.mxu0 0.0
        %510 = vmatpush1.msra.mxu0 0.0
        %511 = vmatprep.subr.mxu0 0.0
        %512 = vmatpush1.msra.mxu0 0.0
        %513 = vmatprep.mubr.f32.mxu0 0.0
        %514 = vmatmul.mubr.f32.gmra.mrb[0].mxu0 %v447
        %v515 = vpop.f32.mrb[0].mxu0
        %v516 = vadd.f32 %v428, %v515
        %v517 = vpop.f32.mrb[0].mxu0
        %v518 = vadd.f32 %v432, %v517
        %519 = vdwg.mxu0
        %520 = vmatprep.subr.mxu0 %v410
        %521 = vmatpush1.msra.mxu0 %v409
        %522 = vmatprep.subr.mxu0 %v414
        %523 = vmatpush1.msra.mxu0 %v413
        %524 = vmatprep.subr.mxu0 %v418
        %525 = vmatpush1.msra.mxu0 %v417
        %526 = vmatprep.subr.mxu0 %v422
        %527 = vmatpush1.msra.mxu0 %v421
        %528 = vmatprep.subr.mxu0 0.0
        %529 = vmatpush1.msra.mxu0 0.0
        %530 = vmatprep.subr.mxu0 0.0
        %531 = vmatpush1.msra.mxu0 0.0
        %532 = vmatprep.subr.mxu0 0.0
        %533 = vmatpush1.msra.mxu0 0.0
        %534 = vmatprep.subr.mxu0 0.0
        %535 = vmatpush1.msra.mxu0 0.0
        %536 = vmatprep.subr.mxu0 0.0
        %537 = vmatpush1.msra.mxu0 0.0
        %538 = vmatprep.subr.mxu0 0.0
        %539 = vmatpush1.msra.mxu0 0.0
        %540 = vmatprep.subr.mxu0 0.0
        %541 = vmatpush1.msra.mxu0 0.0
        %542 = vmatprep.subr.mxu0 0.0
        %543 = vmatpush1.msra.mxu0 0.0
        %544 = vmatprep.subr.mxu0 0.0
        %545 = vmatpush1.msra.mxu0 0.0
        %546 = vmatprep.subr.mxu0 0.0
        %547 = vmatpush1.msra.mxu0 0.0
        %548 = vmatprep.subr.mxu0 0.0
        %549 = vmatpush1.msra.mxu0 0.0
        %550 = vmatprep.subr.mxu0 0.0
        %551 = vmatpush1.msra.mxu0 0.0
        %552 = vmatprep.subr.mxu0 0.0
        %553 = vmatpush1.msra.mxu0 0.0
        %554 = vmatprep.subr.mxu0 0.0
        %555 = vmatpush1.msra.mxu0 0.0
        %556 = vmatprep.subr.mxu0 0.0
        %557 = vmatpush1.msra.mxu0 0.0
        %558 = vmatprep.subr.mxu0 0.0
        %559 = vmatpush1.msra.mxu0 0.0
        %560 = vmatprep.subr.mxu0 0.0
        %561 = vmatpush1.msra.mxu0 0.0
        %562 = vmatprep.subr.mxu0 0.0
        %563 = vmatpush1.msra.mxu0 0.0
        %564 = vmatprep.subr.mxu0 0.0
        %565 = vmatpush1.msra.mxu0 0.0
        %566 = vmatprep.subr.mxu0 0.0
        %567 = vmatpush1.msra.mxu0 0.0
        %568 = vmatprep.subr.mxu0 0.0
        %569 = vmatpush1.msra.mxu0 0.0
        %570 = vmatprep.subr.mxu0 0.0
        %571 = vmatpush1.msra.mxu0 0.0
        %572 = vmatprep.subr.mxu0 0.0
        %573 = vmatpush1.msra.mxu0 0.0
        %574 = vmatprep.subr.mxu0 0.0
        %575 = vmatpush1.msra.mxu0 0.0
        %576 = vmatprep.subr.mxu0 0.0
        %577 = vmatpush1.msra.mxu0 0.0
        %578 = vmatprep.subr.mxu0 0.0
        %579 = vmatpush1.msra.mxu0 0.0
        %580 = vmatprep.subr.mxu0 0.0
        %581 = vmatpush1.msra.mxu0 0.0
        %582 = vmatprep.subr.mxu0 0.0
        %583 = vmatpush1.msra.mxu0 0.0
        %584 = vmatprep.mubr.f32.mxu0 0.0
        %585 = vmatmul.mubr.f32.gmra.mrb[0].mxu0 %v447
        %v586 = vpop.f32.mrb[0].mxu0
        %v587 = vadd.f32 %v436, %v586
        %v588 = vpop.f32.mrb[0].mxu0
        %v589 = vadd.f32 %v440, %v588
        %590 = vdwg.mxu0
        %v591 = vmax.f32 %v516, 0.0
        %v592 = vmax.f32 %v518, 0.0
        %v593 = vmax.f32 %v587, 0.0
        %v594 = vmax.f32 %v589, 0.0
        %v595 = vld [vmem:[#allocation6] sm:$0xff]
        %v596 = vld [vmem:[#allocation6 + $0x8] sm:$0xff]
        %v597 = vld [vmem:[#allocation6 + $0x10] sm:$0xff]
        %v598 = vld [vmem:[#allocation6 + $0x18] sm:$0xff]
        %v599 = vld [vmem:[#allocation6 + $0x20] sm:$0xff]
        %v600 = vld [vmem:[#allocation6 + $0x28] sm:$0xff]
        %v601 = vld [vmem:[#allocation6 + $0x30] sm:$0xff]
        %v602 = vld [vmem:[#allocation6 + $0x38] sm:$0xff]
        %v603 = vld [vmem:[#allocation6 + $0x40] sm:$0xff]
        %v604 = vld [vmem:[#allocation6 + $0x48] sm:$0xff]
        %v605 = vld [vmem:[#allocation6 + $0x50] sm:$0xff]
        %v606 = vld [vmem:[#allocation6 + $0x58] sm:$0xff]
        %v607 = vld [vmem:[#allocation6 + $0x60] sm:$0xff]
        %v608 = vld [vmem:[#allocation6 + $0x68] sm:$0xff]
        %v609 = vld [vmem:[#allocation6 + $0x70] sm:$0xff]
        %v610 = vld [vmem:[#allocation6 + $0x78] sm:$0xff]
        %v611 = vld [vmem:[#allocation6 + $0x80] sm:$0xff]
        %v612 = vld [vmem:[#allocation6 + $0x88] sm:$0xff]
        %v613 = vld [vmem:[#allocation6 + $0x90] sm:$0xff]
        %v614 = vld [vmem:[#allocation6 + $0x98] sm:$0xff]
        %v615 = vld [vmem:[#allocation6 + $0xa0] sm:$0xff]
        %v616 = vld [vmem:[#allocation6 + $0xa8] sm:$0xff]
        %v617 = vld [vmem:[#allocation6 + $0xb0] sm:$0xff]
        %v618 = vld [vmem:[#allocation6 + $0xb8] sm:$0xff]
        %v619 = vld [vmem:[#allocation6 + $0xc0] sm:$0xff]
        %v620 = vld [vmem:[#allocation6 + $0xc8] sm:$0xff]
        %v621 = vld [vmem:[#allocation6 + $0xd0] sm:$0xff]
        %v622 = vld [vmem:[#allocation6 + $0xd8] sm:$0xff]
        %v623 = vld [vmem:[#allocation6 + $0xe0] sm:$0xff]
        %v624 = vld [vmem:[#allocation6 + $0xe8] sm:$0xff]
        %v625 = vld [vmem:[#allocation6 + $0xf0] sm:$0xff]
        %v626 = vld [vmem:[#allocation6 + $0xf8] sm:$0xff]
        %v627 = vld [vmem:[#allocation6 + $0x100] sm:$0xff]
        %v628 = vld [vmem:[#allocation6 + $0x108] sm:$0xff]
        %v629 = vld [vmem:[#allocation6 + $0x110] sm:$0xff]
        %v630 = vld [vmem:[#allocation6 + $0x118] sm:$0xff]
        %v631 = vld [vmem:[#allocation6 + $0x120] sm:$0xff]
        %v632 = vld [vmem:[#allocation6 + $0x128] sm:$0xff]
        %v633 = vld [vmem:[#allocation6 + $0x130] sm:$0xff]
        %v634 = vld [vmem:[#allocation6 + $0x138] sm:$0xff]
        %v635 = vld [vmem:[#allocation6 + $0x140] sm:$0xff]
        %v636 = vld [vmem:[#allocation6 + $0x148] sm:$0xff]
        %v637 = vld [vmem:[#allocation6 + $0x150] sm:$0xff]
        %v638 = vld [vmem:[#allocation6 + $0x158] sm:$0xff]
        %v639 = vld [vmem:[#allocation6 + $0x160] sm:$0xff]
        %v640 = vld [vmem:[#allocation6 + $0x168] sm:$0xff]
        %v641 = vld [vmem:[#allocation6 + $0x170] sm:$0xff]
        %v642 = vld [vmem:[#allocation6 + $0x178] sm:$0xff]
        %v643 = vld [vmem:[#allocation6 + $0x180] sm:$0xff]
        %v644 = vld [vmem:[#allocation6 + $0x188] sm:$0xff]
        %v645 = vld [vmem:[#allocation6 + $0x190] sm:$0xff]
        %v646 = vld [vmem:[#allocation6 + $0x198] sm:$0xff]
        %v647 = vld [vmem:[#allocation6 + $0x1a0] sm:$0xff]
        %v648 = vld [vmem:[#allocation6 + $0x1a8] sm:$0xff]
        %v649 = vld [vmem:[#allocation6 + $0x1b0] sm:$0xff]
        %v650 = vld [vmem:[#allocation6 + $0x1b8] sm:$0xff]
        %v651 = vld [vmem:[#allocation6 + $0x1c0] sm:$0xff]
        %v652 = vld [vmem:[#allocation6 + $0x1c8] sm:$0xff]
        %v653 = vld [vmem:[#allocation6 + $0x1d0] sm:$0xff]
        %v654 = vld [vmem:[#allocation6 + $0x1d8] sm:$0xff]
        %v655 = vld [vmem:[#allocation6 + $0x1e0] sm:$0xff]
        %v656 = vld [vmem:[#allocation6 + $0x1e8] sm:$0xff]
        %v657 = vld [vmem:[#allocation6 + $0x1f0] sm:$0xff]
        %v658 = vld [vmem:[#allocation6 + $0x1f8] sm:$0xff]
        %v659 = vld [vmem:[%s4] sm:$0x1]
        %v661 = vlaneseq
        %v662 = vshrl.u32 %v661, 7
        %v663 = vsub.s32 0, %v662
        %v664 = vrot.slane %v659, %v663
        %666 = vmatprep.subr.mxu0 0.0
        %667 = vmatpush1.msra.mxu0 %v595
        %668 = vmatprep.subr.mxu0 0.0
        %669 = vmatpush1.msra.mxu0 %v596
        %670 = vmatprep.subr.mxu0 0.0
        %671 = vmatpush1.msra.mxu0 %v597
        %672 = vmatprep.subr.mxu0 0.0
        %673 = vmatpush1.msra.mxu0 %v598
        %674 = vmatprep.subr.mxu0 0.0
        %675 = vmatpush1.msra.mxu0 %v599
        %676 = vmatprep.subr.mxu0 0.0
        %677 = vmatpush1.msra.mxu0 %v600
        %678 = vmatprep.subr.mxu0 0.0
        %679 = vmatpush1.msra.mxu0 %v601
        %680 = vmatprep.subr.mxu0 0.0
        %681 = vmatpush1.msra.mxu0 %v602
        %682 = vmatprep.subr.mxu0 0.0
        %683 = vmatpush1.msra.mxu0 %v603
        %684 = vmatprep.subr.mxu0 0.0
        %685 = vmatpush1.msra.mxu0 %v604
        %686 = vmatprep.subr.mxu0 0.0
        %687 = vmatpush1.msra.mxu0 %v605
        %688 = vmatprep.subr.mxu0 0.0
        %689 = vmatpush1.msra.mxu0 %v606
        %690 = vmatprep.subr.mxu0 0.0
        %691 = vmatpush1.msra.mxu0 %v607
        %692 = vmatprep.subr.mxu0 0.0
        %693 = vmatpush1.msra.mxu0 %v608
        %694 = vmatprep.subr.mxu0 0.0
        %695 = vmatpush1.msra.mxu0 %v609
        %696 = vmatprep.subr.mxu0 0.0
        %697 = vmatpush1.msra.mxu0 %v610
        %698 = vmatprep.subr.mxu0 0.0
        %699 = vmatpush1.msra.mxu0 %v611
        %700 = vmatprep.subr.mxu0 0.0
        %701 = vmatpush1.msra.mxu0 %v612
        %702 = vmatprep.subr.mxu0 0.0
        %703 = vmatpush1.msra.mxu0 %v613
        %704 = vmatprep.subr.mxu0 0.0
        %705 = vmatpush1.msra.mxu0 %v614
        %706 = vmatprep.subr.mxu0 0.0
        %707 = vmatpush1.msra.mxu0 %v615
        %708 = vmatprep.subr.mxu0 0.0
        %709 = vmatpush1.msra.mxu0 %v616
        %710 = vmatprep.subr.mxu0 0.0
        %711 = vmatpush1.msra.mxu0 %v617
        %712 = vmatprep.subr.mxu0 0.0
        %713 = vmatpush1.msra.mxu0 %v618
        %714 = vmatprep.subr.mxu0 0.0
        %715 = vmatpush1.msra.mxu0 %v619
        %716 = vmatprep.subr.mxu0 0.0
        %717 = vmatpush1.msra.mxu0 %v620
        %718 = vmatprep.subr.mxu0 0.0
        %719 = vmatpush1.msra.mxu0 %v621
        %720 = vmatprep.subr.mxu0 0.0
        %721 = vmatpush1.msra.mxu0 %v622
        %722 = vmatprep.subr.mxu0 0.0
        %723 = vmatpush1.msra.mxu0 %v623
        %724 = vmatprep.subr.mxu0 0.0
        %725 = vmatpush1.msra.mxu0 %v624
        %726 = vmatprep.subr.mxu0 0.0
        %727 = vmatpush1.msra.mxu0 %v625
        %728 = vmatprep.subr.mxu0 0.0
        %729 = vmatpush1.msra.mxu0 %v626
        %730 = vmatprep.mubr.f32.mxu0 %v592
        %731 = vmatmul.mubr.f32.gmra.mrb[0].mxu0 %v591
        %v732 = vpop.f32.mrb[0].mxu0
        %v733 = vadd.f32 %v664, %v732
        %v734 = vpop.f32.mrb[0].mxu0
        %735 = vdwg.mxu0
        %736 = vmatprep.subr.mxu0 0.0
        %737 = vmatpush1.msra.mxu0 %v627
        %738 = vmatprep.subr.mxu0 0.0
        %739 = vmatpush1.msra.mxu0 %v628
        %740 = vmatprep.subr.mxu0 0.0
        %741 = vmatpush1.msra.mxu0 %v629
        %742 = vmatprep.subr.mxu0 0.0
        %743 = vmatpush1.msra.mxu0 %v630
        %744 = vmatprep.subr.mxu0 0.0
        %745 = vmatpush1.msra.mxu0 %v631
        %746 = vmatprep.subr.mxu0 0.0
        %747 = vmatpush1.msra.mxu0 %v632
        %748 = vmatprep.subr.mxu0 0.0
        %749 = vmatpush1.msra.mxu0 %v633
        %750 = vmatprep.subr.mxu0 0.0
        %751 = vmatpush1.msra.mxu0 %v634
        %752 = vmatprep.subr.mxu0 0.0
        %753 = vmatpush1.msra.mxu0 %v635
        %754 = vmatprep.subr.mxu0 0.0
        %755 = vmatpush1.msra.mxu0 %v636
        %756 = vmatprep.subr.mxu0 0.0
        %757 = vmatpush1.msra.mxu0 %v637
        %758 = vmatprep.subr.mxu0 0.0
        %759 = vmatpush1.msra.mxu0 %v638
        %760 = vmatprep.subr.mxu0 0.0
        %761 = vmatpush1.msra.mxu0 %v639
        %762 = vmatprep.subr.mxu0 0.0
        %763 = vmatpush1.msra.mxu0 %v640
        %764 = vmatprep.subr.mxu0 0.0
        %765 = vmatpush1.msra.mxu0 %v641
        %766 = vmatprep.subr.mxu0 0.0
        %767 = vmatpush1.msra.mxu0 %v642
        %768 = vmatprep.subr.mxu0 0.0
        %769 = vmatpush1.msra.mxu0 %v643
        %770 = vmatprep.subr.mxu0 0.0
        %771 = vmatpush1.msra.mxu0 %v644
        %772 = vmatprep.subr.mxu0 0.0
        %773 = vmatpush1.msra.mxu0 %v645
        %774 = vmatprep.subr.mxu0 0.0
        %775 = vmatpush1.msra.mxu0 %v646
        %776 = vmatprep.subr.mxu0 0.0
        %777 = vmatpush1.msra.mxu0 %v647
        %778 = vmatprep.subr.mxu0 0.0
        %779 = vmatpush1.msra.mxu0 %v648
        %780 = vmatprep.subr.mxu0 0.0
        %781 = vmatpush1.msra.mxu0 %v649
        %782 = vmatprep.subr.mxu0 0.0
        %783 = vmatpush1.msra.mxu0 %v650
        %784 = vmatprep.subr.mxu0 0.0
        %785 = vmatpush1.msra.mxu0 %v651
        %786 = vmatprep.subr.mxu0 0.0
        %787 = vmatpush1.msra.mxu0 %v652
        %788 = vmatprep.subr.mxu0 0.0
        %789 = vmatpush1.msra.mxu0 %v653
        %790 = vmatprep.subr.mxu0 0.0
        %791 = vmatpush1.msra.mxu0 %v654
        %792 = vmatprep.subr.mxu0 0.0
        %793 = vmatpush1.msra.mxu0 %v655
        %794 = vmatprep.subr.mxu0 0.0
        %795 = vmatpush1.msra.mxu0 %v656
        %796 = vmatprep.subr.mxu0 0.0
        %797 = vmatpush1.msra.mxu0 %v657
        %798 = vmatprep.subr.mxu0 0.0
        %799 = vmatpush1.msra.mxu0 %v658
        %800 = vmatprep.mubr.f32.mxu0 %v594
        %801 = vmatmul.mubr.f32.gmra.mrb[0].mxu0 %v593
        %v802 = vpop.f32.mrb[0].mxu0
        %v803 = vadd.f32 %v733, %v802
        %v804 = vpop.f32.mrb[0].mxu0
        %805 = vdwg.mxu0
        %v806 = vmax.f32 %v803, 0.0
        %v807 = vld [vmem:[#allocation7] sm:$0xff]
        %v808 = vld [vmem:[#allocation7 + $0x8] sm:$0xff]
        %v809 = vld [vmem:[#allocation7 + $0x10] sm:$0xff]
        %v810 = vld [vmem:[#allocation7 + $0x18] sm:$0xff]
        %v811 = vld [vmem:[#allocation7 + $0x20] sm:$0xff]
        %v812 = vld [vmem:[#allocation7 + $0x28] sm:$0xff]
        %v813 = vld [vmem:[#allocation7 + $0x30] sm:$0xff]
        %v814 = vld [vmem:[#allocation7 + $0x38] sm:$0xff]
        %v815 = vld [vmem:[#allocation7 + $0x40] sm:$0xff]
        %v816 = vld [vmem:[#allocation7 + $0x48] sm:$0xff]
        %v817 = vld [vmem:[#allocation7 + $0x50] sm:$0xff]
        %v818 = vld [vmem:[#allocation7 + $0x58] sm:$0xff]
        %v819 = vld [vmem:[#allocation7 + $0x60] sm:$0xff]
        %v820 = vld [vmem:[#allocation7 + $0x68] sm:$0xff]
        %v821 = vld [vmem:[#allocation7 + $0x70] sm:$0xff]
        %v822 = vld [vmem:[#allocation7 + $0x78] sm:$0xff]
        %v823 = vld [vmem:[%s6] sm:$0x1]
        %v825 = vlaneseq
        %v826 = vshrl.u32 %v825, 7
        %v827 = vsub.s32 0, %v826
        %v828 = vrot.slane %v823, %v827
        %830 = vmatprep.subr.mxu0 0.0
        %831 = vmatpush1.msra.mxu0 %v807
        %832 = vmatprep.subr.mxu0 0.0
        %833 = vmatpush1.msra.mxu0 %v808
        %834 = vmatprep.subr.mxu0 0.0
        %835 = vmatpush1.msra.mxu0 %v809
        %836 = vmatprep.subr.mxu0 0.0
        %837 = vmatpush1.msra.mxu0 %v810
        %838 = vmatprep.subr.mxu0 0.0
        %839 = vmatpush1.msra.mxu0 %v811
        %840 = vmatprep.subr.mxu0 0.0
        %841 = vmatpush1.msra.mxu0 %v812
        %842 = vmatprep.subr.mxu0 0.0
        %843 = vmatpush1.msra.mxu0 %v813
        %844 = vmatprep.subr.mxu0 0.0
        %845 = vmatpush1.msra.mxu0 %v814
        %846 = vmatprep.subr.mxu0 0.0
        %847 = vmatpush1.msra.mxu0 %v815
        %848 = vmatprep.subr.mxu0 0.0
        %849 = vmatpush1.msra.mxu0 %v816
        %850 = vmatprep.subr.mxu0 0.0
        %851 = vmatpush1.msra.mxu0 %v817
        %852 = vmatprep.subr.mxu0 0.0
        %853 = vmatpush1.msra.mxu0 %v818
        %854 = vmatprep.subr.mxu0 0.0
        %855 = vmatpush1.msra.mxu0 %v819
        %856 = vmatprep.subr.mxu0 0.0
        %857 = vmatpush1.msra.mxu0 %v820
        %858 = vmatprep.subr.mxu0 0.0
        %859 = vmatpush1.msra.mxu0 %v821
        %860 = vmatprep.subr.mxu0 0.0
        %861 = vmatpush1.msra.mxu0 %v822
        %862 = vmatprep.subr.mxu0 0.0
        %863 = vmatpush1.msra.mxu0 0.0
        %864 = vmatprep.subr.mxu0 0.0
        %865 = vmatpush1.msra.mxu0 0.0
        %866 = vmatprep.subr.mxu0 0.0
        %867 = vmatpush1.msra.mxu0 0.0
        %868 = vmatprep.subr.mxu0 0.0
        %869 = vmatpush1.msra.mxu0 0.0
        %870 = vmatprep.subr.mxu0 0.0
        %871 = vmatpush1.msra.mxu0 0.0
        %872 = vmatprep.subr.mxu0 0.0
        %873 = vmatpush1.msra.mxu0 0.0
        %874 = vmatprep.subr.mxu0 0.0
        %875 = vmatpush1.msra.mxu0 0.0
        %876 = vmatprep.subr.mxu0 0.0
        %877 = vmatpush1.msra.mxu0 0.0
        %878 = vmatprep.subr.mxu0 0.0
        %879 = vmatpush1.msra.mxu0 0.0
        %880 = vmatprep.subr.mxu0 0.0
        %881 = vmatpush1.msra.mxu0 0.0
        %882 = vmatprep.subr.mxu0 0.0
        %883 = vmatpush1.msra.mxu0 0.0
        %884 = vmatprep.subr.mxu0 0.0
        %885 = vmatpush1.msra.mxu0 0.0
        %886 = vmatprep.subr.mxu0 0.0
        %887 = vmatpush1.msra.mxu0 0.0
        %888 = vmatprep.subr.mxu0 0.0
        %889 = vmatpush1.msra.mxu0 0.0
        %890 = vmatprep.subr.mxu0 0.0
        %891 = vmatpush1.msra.mxu0 0.0
        %892 = vmatprep.subr.mxu0 0.0
        %893 = vmatpush1.msra.mxu0 0.0
        %894 = vmatprep.mubr.f32.mxu0 0.0
        %895 = vmatmul.mubr.f32.gmra.mrb[0].mxu0 %v806
        %v896 = vpop.f32.mrb[0].mxu0
        %v897 = vadd.f32 %v828, %v896
        %v898 = vpop.f32.mrb[0].mxu0
        %899 = vdwg.mxu0
        %v900 = vmax.f32 %v897, 0.0
        %v901 = vld [vmem:[#allocation9] sm:$0xff]
        %v902 = vld [vmem:[#allocation9 + $0x8] sm:$0xff]
        %v903 = vld [vmem:[#allocation9 + $0x10] sm:$0xff]
        %v904 = vld [vmem:[#allocation9 + $0x18] sm:$0xff]
        %v905 = vld [vmem:[#allocation9 + $0x20] sm:$0xff]
        %v906 = vld [vmem:[#allocation9 + $0x28] sm:$0xff]
        %v907 = vld [vmem:[#allocation9 + $0x30] sm:$0xff]
        %v908 = vld [vmem:[#allocation9 + $0x38] sm:$0xff]
        %v909 = vld [vmem:[#allocation9 + $0x40] sm:$0xff]
        %v910 = vld [vmem:[#allocation9 + $0x48] sm:$0xff]
        %v911 = vld [vmem:[#allocation9 + $0x50] sm:$0xff]
        %v912 = vld [vmem:[#allocation9 + $0x58] sm:$0xff]
        %v913 = vld [vmem:[#allocation9 + $0x60] sm:$0xff]
        %v914 = vld [vmem:[#allocation9 + $0x68] sm:$0xff]
        %v915 = vld [vmem:[#allocation9 + $0x70] sm:$0xff]
        %v916 = vld [vmem:[#allocation9 + $0x78] sm:$0xff]
        %v917 = vld [vmem:[%s8] sm:$0x1]
        %v919 = vlaneseq
        %v920 = vshrl.u32 %v919, 7
        %v921 = vsub.s32 0, %v920
        %v922 = vrot.slane %v917, %v921
        %924 = vmatprep.subr.mxu0 0.0
        %925 = vmatpush1.msra.mxu0 %v901
        %926 = vmatprep.subr.mxu0 0.0
        %927 = vmatpush1.msra.mxu0 %v902
        %928 = vmatprep.subr.mxu0 0.0
        %929 = vmatpush1.msra.mxu0 %v903
        %930 = vmatprep.subr.mxu0 0.0
        %931 = vmatpush1.msra.mxu0 %v904
        %932 = vmatprep.subr.mxu0 0.0
        %933 = vmatpush1.msra.mxu0 %v905
        %934 = vmatprep.subr.mxu0 0.0
        %935 = vmatpush1.msra.mxu0 %v906
        %936 = vmatprep.subr.mxu0 0.0
        %937 = vmatpush1.msra.mxu0 %v907
        %938 = vmatprep.subr.mxu0 0.0
        %939 = vmatpush1.msra.mxu0 %v908
        %940 = vmatprep.subr.mxu0 0.0
        %941 = vmatpush1.msra.mxu0 %v909
        %942 = vmatprep.subr.mxu0 0.0
        %943 = vmatpush1.msra.mxu0 %v910
        %944 = vmatprep.subr.mxu0 0.0
        %945 = vmatpush1.msra.mxu0 %v911
        %946 = vmatprep.subr.mxu0 0.0
        %947 = vmatpush1.msra.mxu0 %v912
        %948 = vmatprep.subr.mxu0 0.0
        %949 = vmatpush1.msra.mxu0 %v913
        %950 = vmatprep.subr.mxu0 0.0
        %951 = vmatpush1.msra.mxu0 %v914
        %952 = vmatprep.subr.mxu0 0.0
        %953 = vmatpush1.msra.mxu0 %v915
        %954 = vmatprep.subr.mxu0 0.0
        %955 = vmatpush1.msra.mxu0 %v916
        %956 = vmatprep.subr.mxu0 0.0
        %957 = vmatpush1.msra.mxu0 0.0
        %958 = vmatprep.subr.mxu0 0.0
        %959 = vmatpush1.msra.mxu0 0.0
        %960 = vmatprep.subr.mxu0 0.0
        %961 = vmatpush1.msra.mxu0 0.0
        %962 = vmatprep.subr.mxu0 0.0
        %963 = vmatpush1.msra.mxu0 0.0
        %964 = vmatprep.subr.mxu0 0.0
        %965 = vmatpush1.msra.mxu0 0.0
        %966 = vmatprep.subr.mxu0 0.0
        %967 = vmatpush1.msra.mxu0 0.0
        %968 = vmatprep.subr.mxu0 0.0
        %969 = vmatpush1.msra.mxu0 0.0
        %970 = vmatprep.subr.mxu0 0.0
        %971 = vmatpush1.msra.mxu0 0.0
        %972 = vmatprep.subr.mxu0 0.0
        %973 = vmatpush1.msra.mxu0 0.0
        %974 = vmatprep.subr.mxu0 0.0
        %975 = vmatpush1.msra.mxu0 0.0
        %976 = vmatprep.subr.mxu0 0.0
        %977 = vmatpush1.msra.mxu0 0.0
        %978 = vmatprep.subr.mxu0 0.0
        %979 = vmatpush1.msra.mxu0 0.0
        %980 = vmatprep.subr.mxu0 0.0
        %981 = vmatpush1.msra.mxu0 0.0
        %982 = vmatprep.subr.mxu0 0.0
        %983 = vmatpush1.msra.mxu0 0.0
        %984 = vmatprep.subr.mxu0 0.0
        %985 = vmatpush1.msra.mxu0 0.0
        %986 = vmatprep.subr.mxu0 0.0
        %987 = vmatpush1.msra.mxu0 0.0
        %988 = vmatprep.mubr.f32.mxu0 0.0
        %989 = vmatmul.mubr.f32.gmra.mrb[0].mxu0 %v900
        %v990 = vpop.f32.mrb[0].mxu0
        %v991 = vadd.f32 %v922, %v990
        %v992 = vpop.f32.mrb[0].mxu0
        %993 = vdwg.mxu0
        %994 = vst [vmem:[%s405] sm:$0xff] %v991
        %p995 = scmp.lt.s32.totalorder %s25, 1
        %s996 = scalar_select %p995, %s25, 1
        %s997 = smul.addr %s996, 8
        %s998 = scalar_lea.vmem %s9, %s997
        // Predicated region
        $region77: #{uci_mlp_forward.1} parent=55 // pred_check
          %p999 = pneg %p237
        $region78: #{uci_mlp_forward.1} parent=55 // pred_check_branch
          %1001 = sbr.rel (%p999) target = $region80
        $region79: #{uci_mlp_forward.1} parent=55 // pred_region
          _
        $region80: #{uci_mlp_forward.1} parent=55 // pred_fallthru
          _
      $region56: #{uci_mlp_forward.1} parent=5 // pred_fallthru
        _
      %p1002 = scmp.le.s32.totalorder 2, %s20
      // Predicated region
      $region81: #{uci_mlp_forward.1} parent=5 // pred_check
        %p1003 = pneg %p1002
      $region82: #{uci_mlp_forward.1} parent=5 // pred_check_branch
        %1005 = sbr.rel (%p1003) target = $region84
      $region83: #{uci_mlp_forward.1} parent=5 // pred_region
        %s1006 = ssub.s32 %s20, 2
        // Predicated region
        $region85: #{uci_mlp_forward.1} parent=83 // pred_check
          %p1007 = pneg %p243
        $region86: #{uci_mlp_forward.1} parent=83 // pred_check_branch
          %1009 = sbr.rel (%p1007) target = $region88
        $region87: #{uci_mlp_forward.1} parent=83 // pred_region
          %p1010 = scmp.lt.s32.totalorder %s26, 1
          %s1011 = scalar_select %p1010, %s26, 1
          %s1012 = smul.addr %s1011, 8
          %s1013 = scalar_lea.vmem %s9, %s1012
        $region88: #{uci_mlp_forward.1} parent=83 // pred_fallthru
          _
      $region84: #{uci_mlp_forward.1} parent=5 // pred_fallthru
        _
    $region6: #{uci_mlp_forward.1} parent=1 // loop_footer
      %s24 = sadd.s32 1, %s20
    $region7: #{uci_mlp_forward.1} parent=1 // loop_footer_branch
      %19 = sbr.rel target = $region3
    $region8: #{uci_mlp_forward.1} parent=1 // loop_exit
      _
    %1014 = vsyncpa [#allocation3], 1
    %s1015 = scalar_lea.sflag [#allocation3], 1
    %1016 = vsyncpa %s1015, 1
    %1017 = vsyncpa [#allocation5], 1
    %1018 = vsyncpa [#allocation8], 1

</llo_original>
